<compile_context>
chip_gen: v6e
topology: v6e:2x2x1
jax: 0.10.0
libtpu: 0.0.40
codegen_flags: <defaults>
</compile_context>

<pallas_src>
import jax
import jax.numpy as jnp
from jax.experimental import pallas as pl
from jax.experimental.pallas import tpu as pltpu


# ------------------------- fused Pallas kernel -------------------------

def panel_fused_kernel(xu_ref, scxu_ref, wbd_ref, wpw_ref, cp_ref, prelu_ref,
                       o_ref, pad_ref):
    # xu_ref:    (1, H2, W2, Cin4)   pixel-unshuffled input x
    # scxu_ref:  (1, H2, W2, C4)     pixel-unshuffled skip connection
    # wbd_ref:   (Cin4, C4)          block-diagonal c_ffc weight = kron(w_cffc, I4)
    # wpw_ref:   (C4, C4)            pointwise 1x1 weight, laid out (cin, cout)
    # cp_ref:    (11, C4)            rows 0..8: depthwise 3x3 taps (row = di*3+dj);
    #                                row 9: scale, row 10: bias
    #                                (GroupNorm affine with eval-BatchNorm folded in)
    # prelu_ref: (1,) in SMEM        shared PReLU slope
    # o_ref:     (1, H2, W2, C4)
    # pad_ref:   (H2+2, W2+2, C4)    VMEM scratch providing the zero halo for the 3x3
    H2, W2, C4 = o_ref.shape[1], o_ref.shape[2], o_ref.shape[3]
    Cin4 = xu_ref.shape[3]
    M = H2 * W2

    cp = cp_ref[...]                                  # (11, C4)

    # ---- c_ffc 1x1 conv fused with pixel_unshuffle (MXU matmul) ----
    xu = xu_ref[0].reshape(M, Cin4)
    s_in = jnp.dot(xu, wbd_ref[...], preferred_element_type=jnp.float32)     # (M, C4)

    # ---- depthwise 3x3, padding=1: zero halo lives only in VMEM scratch ----
    pad_ref[...] = jnp.zeros_like(pad_ref)
    pad_ref[1:H2 + 1, 1:W2 + 1, :] = s_in.reshape(H2, W2, C4)
    sp = pad_ref[...]                                 # (H2+2, W2+2, C4)
    acc = jnp.zeros((H2, W2, C4), jnp.float32)
    for k in range(9):
        di, dj = k // 3, k % 3
        acc = acc + sp[di:di + H2, dj:dj + W2, :] * cp[k]

    # ---- pointwise 1x1 conv (MXU) ----
    y = jnp.dot(acc.reshape(M, C4), wpw_ref[...], preferred_element_type=jnp.float32)

    # ---- GroupNorm(1, C4) over the whole sample, single-pass statistics ----
    inv_n = 1.0 / float(M * C4)
    mean = jnp.sum(y) * inv_n
    var = jnp.sum(y * y) * inv_n - mean * mean
    y = (y - mean) * jax.lax.rsqrt(var + 1e-5)

    # ---- folded (GroupNorm affine ∘ eval BatchNorm) + PReLU ----
    y = y * cp[9:10, :] + cp[10:11, :]
    a = prelu_ref[0]
    y = jnp.where(y >= 0.0, y, a * y)

    # ---- fused skip add (sc_x was pixel-unshuffled by the wrapper) ----
    o_ref[0] = (y.reshape(H2, W2, C4) + scxu_ref[0]).astype(o_ref.dtype)


# ------------------------- JAX glue -------------------------

def _pixel_unshuffle_nhwc(x, r=2):
    # matches torch.nn.functional.pixel_unshuffle channel ordering: c*r*r + i*r + j
    N, H, W, C = x.shape
    x = x.reshape(N, H // r, r, W // r, r, C)
    x = x.transpose(0, 1, 3, 5, 2, 4)
    return x.reshape(N, H // r, W // r, C * r * r)


def _pixel_shuffle_nhwc(x, r=2):
    N, H2, W2, C4 = x.shape
    C = C4 // (r * r)
    x = x.reshape(N, H2, W2, C, r, r)
    x = x.transpose(0, 1, 4, 2, 5, 3)
    return x.reshape(N, H2 * r, W2 * r, C)


def init_params(key, in_channels, out_channels):
    C4 = out_channels * 4
    ks = jax.random.split(key, 3)
    p = {}
    # c_ffc: Conv2d(Cin, Cout, 1, bias=False) -> stored as (Cin, Cout) for matmul
    p['w_cffc'] = jax.random.normal(ks[0], (in_channels, out_channels), jnp.float32) * 0.2
    # s_ffc[0]: depthwise Conv2d(4C, 4C, 3, groups=4C, bias=False) -> (3, 3, 4C)
    p['w_dw'] = jax.random.normal(ks[1], (3, 3, C4), jnp.float32) * 0.2
    # s_ffc[1]: Conv2d(4C, 4C, 1, bias=False) -> (cin, cout)
    p['w_pw'] = jax.random.normal(ks[2], (C4, C4), jnp.float32) * 0.2
    # s_ffc[2]: GroupNorm(1, 4C) affine (default init)
    p['gn_g'] = jnp.ones((1, C4), jnp.float32)
    p['gn_b'] = jnp.zeros((1, C4), jnp.float32)
    # s_ffc[3]: BatchNorm2d(4C) -- inference mode with default running stats
    p['bn_g'] = jnp.ones((1, C4), jnp.float32)
    p['bn_b'] = jnp.zeros((1, C4), jnp.float32)
    p['bn_m'] = jnp.zeros((1, C4), jnp.float32)
    p['bn_v'] = jnp.ones((1, C4), jnp.float32)
    # s_ffc[4]: PReLU(init=0.5), single shared parameter
    p['prelu'] = jnp.full((1,), 0.5, jnp.float32)
    return p


@jax.jit
def panel_forward(x_nchw, sc_x_nchw, params):
    N, Cin, H, W = x_nchw.shape
    Cout = params['w_cffc'].shape[1]
    C4 = 4 * Cout
    Cin4 = 4 * Cin
    H2, W2 = H // 2, W // 2

    x = jnp.transpose(x_nchw, (0, 2, 3, 1)).astype(jnp.float32)       # NHWC
    scx = jnp.transpose(sc_x_nchw, (0, 2, 3, 1)).astype(jnp.float32)  # NHWC

    # --- fuse c_ffc (1x1) with pixel_unshuffle: unshuffle x once, expand the
    #     weight block-diagonally; the conv then runs inside the fused kernel. ---
    xu = _pixel_unshuffle_nhwc(x, 2)                                  # (N, H2, W2, Cin4)
    scx_u = _pixel_unshuffle_nhwc(scx, 2)                             # (N, H2, W2, C4)
    w_bd = jnp.kron(params['w_cffc'], jnp.eye(4, dtype=jnp.float32))  # (Cin4, C4)

    # --- fold eval-mode BatchNorm into the GroupNorm affine ---
    inv_std = jax.lax.rsqrt(params['bn_v'] + 1e-5)
    scale = params['gn_g'] * params['bn_g'] * inv_std                         # (1, C4)
    bias = (params['gn_b'] - params['bn_m']) * params['bn_g'] * inv_std + params['bn_b']
    # pack all per-channel params into one array: rows 0..8 depthwise taps, 9 scale, 10 bias
    cparams = jnp.concatenate([params['w_dw'].reshape(9, C4), scale, bias], axis=0)  # (11, C4)

    out_u = pl.pallas_call(
        panel_fused_kernel,
        out_shape=jax.ShapeDtypeStruct((N, H2, W2, C4), jnp.float32),
        grid=(N,),
        in_specs=[
            pl.BlockSpec((1, H2, W2, Cin4), lambda n: (n, 0, 0, 0)),
            pl.BlockSpec((1, H2, W2, C4), lambda n: (n, 0, 0, 0)),
            pl.BlockSpec((Cin4, C4), lambda n: (0, 0)),
            pl.BlockSpec((C4, C4), lambda n: (0, 0)),
            pl.BlockSpec((11, C4), lambda n: (0, 0)),
            pl.BlockSpec(memory_space=pltpu.MemorySpace.SMEM),
        ],
        out_specs=pl.BlockSpec((1, H2, W2, C4), lambda n: (n, 0, 0, 0)),
        scratch_shapes=[pltpu.VMEM((H2 + 2, W2 + 2, C4), jnp.float32)],
        compiler_params=pltpu.CompilerParams(
            dimension_semantics=("parallel",),
            vmem_limit_bytes=64 * 1024 * 1024),
    )(xu, scx_u, w_bd, params['w_pw'], cparams, params['prelu'])

    out_nhwc = _pixel_shuffle_nhwc(out_u, 2)            # (N, H, W, Cout) == sc_x + s_out
    return jnp.transpose(out_nhwc, (0, 3, 1, 2))        # back to NCHW


if __name__ == "__main__":
    key = jax.random.PRNGKey(0)
    k_x, k_sc, k_p = jax.random.split(key, 3)

    N, Cin, Cout, H, W = 2, 4, 8, 16, 16
    x = jax.random.normal(k_x, (N, Cin, H, W), jnp.float32)
    sc_x = jax.random.normal(k_sc, (N, Cout, H, W), jnp.float32)
    params = init_params(k_p, Cin, Cout)

    out = panel_forward(x, sc_x, params)
    out = jax.block_until_ready(out)
    assert out.shape == (N, Cout, H, W), out.shape
    assert bool(jnp.all(jnp.isfinite(out)))
    print("KERNEL_OK")
</pallas_src>

<mosaic_0001>
module attributes {stable_mosaic.version = 11 : i64} {
  func.func @panel_fused_kernel(%arg0: i32, %arg1: memref<1x8x8x16xf32, #tpu.memory_space<vmem>>, %arg2: memref<1x8x8x32xf32, #tpu.memory_space<vmem>>, %arg3: memref<16x32xf32, #tpu.memory_space<vmem>>, %arg4: memref<32x32xf32, #tpu.memory_space<vmem>>, %arg5: memref<11x32xf32, #tpu.memory_space<vmem>>, %arg6: memref<1xf32, #tpu.memory_space<smem>>, %arg7: memref<1x8x8x32xf32, #tpu.memory_space<vmem>>, %arg8: memref<10x10x32xf32, #tpu.memory_space<vmem>>) attributes {dimension_semantics = [#tpu.dimension_semantics<parallel>], iteration_bounds = array<i64: 2>, scalar_prefetch = 0 : i64, scratch_operands = 1 : i64, tpu.core_type = #tpu.core_type<tc>, window_params = [{transform_indices = @transform_0, window_bounds = array<i64: 1, 8, 8, 16>}, {transform_indices = @transform_1, window_bounds = array<i64: 1, 8, 8, 32>}, {pipeline_mode = #tpu.pipeline_mode<synchronous>, transform_indices = @transform_2, window_bounds = array<i64: 16, 32>}, {pipeline_mode = #tpu.pipeline_mode<synchronous>, transform_indices = @transform_3, window_bounds = array<i64: 32, 32>}, {pipeline_mode = #tpu.pipeline_mode<synchronous>, transform_indices = @transform_4, window_bounds = array<i64: 11, 32>}, {transform_indices = @transform_5, window_bounds = array<i64: 1>}, {transform_indices = @transform_6, window_bounds = array<i64: 1, 8, 8, 32>}]} {
    %c0 = arith.constant 0 : index
    %c0_0 = arith.constant 0 : index
    %0 = vector.load %arg5[%c0, %c0_0] : memref<11x32xf32, #tpu.memory_space<vmem>>, vector<11x32xf32>
    %c0_1 = arith.constant 0 : index
    %c0_2 = arith.constant 0 : index
    %c0_3 = arith.constant 0 : index
    %c0_4 = arith.constant 0 : index
    %1 = vector.load %arg1[%c0_1, %c0_2, %c0_3, %c0_4] : memref<1x8x8x16xf32, #tpu.memory_space<vmem>>, vector<1x8x8x16xf32>
    %2 = vector.shape_cast %1 : vector<1x8x8x16xf32> to vector<8x8x16xf32>
    %3 = vector.shape_cast %2 : vector<8x8x16xf32> to vector<64x16xf32>
    %c0_5 = arith.constant 0 : index
    %c0_6 = arith.constant 0 : index
    %4 = vector.load %arg3[%c0_5, %c0_6] : memref<16x32xf32, #tpu.memory_space<vmem>>, vector<16x32xf32>
    %cst = arith.constant dense<0.000000e+00> : vector<64x32xf32>
    %5 = tpu.matmul %3, %4, %cst {dimension_numbers = #tpu.dot_dimension_numbers<[1], [0], [0], [1], [0, 0, 1, 1], [], []>} : vector<64x16xf32>, vector<16x32xf32>, vector<64x32xf32> -> vector<64x32xf32>
    %cst_7 = arith.constant 0.000000e+00 : f32
    %6 = vector.broadcast %cst_7 : f32 to vector<10x10x32xf32>
    %c0_8 = arith.constant 0 : index
    %c0_9 = arith.constant 0 : index
    %c0_10 = arith.constant 0 : index
    %7 = vector.load %arg8[%c0_8, %c0_9, %c0_10] : memref<10x10x32xf32, #tpu.memory_space<vmem>>, vector<10x10x32xf32>
    tpu.vector_store %arg8[%c0_8, %c0_9, %c0_10], %6 {strides = array<i32>} : memref<10x10x32xf32, #tpu.memory_space<vmem>>, vector<10x10x32xf32>,
    %8 = vector.shape_cast %5 : vector<64x32xf32> to vector<8x8x32xf32>
    %c1 = arith.constant 1 : index
    %c1_11 = arith.constant 1 : index
    %c0_12 = arith.constant 0 : index
    %9 = vector.load %arg8[%c1, %c1_11, %c0_12] : memref<10x10x32xf32, #tpu.memory_space<vmem>>, vector<8x8x32xf32>
    tpu.vector_store %arg8[%c1, %c1_11, %c0_12], %8 {strides = array<i32>} : memref<10x10x32xf32, #tpu.memory_space<vmem>>, vector<8x8x32xf32>,
    %c0_13 = arith.constant 0 : index
    %c0_14 = arith.constant 0 : index
    %c0_15 = arith.constant 0 : index
    %10 = vector.load %arg8[%c0_13, %c0_14, %c0_15] : memref<10x10x32xf32, #tpu.memory_space<vmem>>, vector<10x10x32xf32>
    %cst_16 = arith.constant 0.000000e+00 : f32
    %11 = vector.broadcast %cst_16 : f32 to vector<8x8x32xf32>
    %12 = vector.extract_strided_slice %10 {offsets = [0, 0, 0], sizes = [8, 8, 32], strides = [1, 1, 1]} : vector<10x10x32xf32> to vector<8x8x32xf32>
    %13 = vector.extract_strided_slice %0 {offsets = [0, 0], sizes = [1, 32], strides = [1, 1]} : vector<11x32xf32> to vector<1x32xf32>
    %14 = vector.shape_cast %13 : vector<1x32xf32> to vector<32xf32>
    %15 = vector.shape_cast %14 : vector<32xf32> to vector<1x1x32xf32>
    %16 = vector.broadcast %15 : vector<1x1x32xf32> to vector<8x8x32xf32>
    %17 = arith.mulf %12, %16 : vector<8x8x32xf32>
    %18 = arith.addf %11, %17 : vector<8x8x32xf32>
    %19 = vector.extract_strided_slice %10 {offsets = [0, 1, 0], sizes = [8, 8, 32], strides = [1, 1, 1]} : vector<10x10x32xf32> to vector<8x8x32xf32>
    %20 = vector.extract_strided_slice %0 {offsets = [1, 0], sizes = [1, 32], strides = [1, 1]} : vector<11x32xf32> to vector<1x32xf32>
    %21 = vector.shape_cast %20 : vector<1x32xf32> to vector<32xf32>
    %22 = vector.shape_cast %21 : vector<32xf32> to vector<1x1x32xf32>
    %23 = vector.broadcast %22 : vector<1x1x32xf32> to vector<8x8x32xf32>
    %24 = arith.mulf %19, %23 : vector<8x8x32xf32>
    %25 = arith.addf %18, %24 : vector<8x8x32xf32>
    %26 = vector.extract_strided_slice %10 {offsets = [0, 2, 0], sizes = [8, 8, 32], strides = [1, 1, 1]} : vector<10x10x32xf32> to vector<8x8x32xf32>
    %27 = vector.extract_strided_slice %0 {offsets = [2, 0], sizes = [1, 32], strides = [1, 1]} : vector<11x32xf32> to vector<1x32xf32>
    %28 = vector.shape_cast %27 : vector<1x32xf32> to vector<32xf32>
    %29 = vector.shape_cast %28 : vector<32xf32> to vector<1x1x32xf32>
    %30 = vector.broadcast %29 : vector<1x1x32xf32> to vector<8x8x32xf32>
    %31 = arith.mulf %26, %30 : vector<8x8x32xf32>
    %32 = arith.addf %25, %31 : vector<8x8x32xf32>
    %33 = vector.extract_strided_slice %10 {offsets = [1, 0, 0], sizes = [8, 8, 32], strides = [1, 1, 1]} : vector<10x10x32xf32> to vector<8x8x32xf32>
    %34 = vector.extract_strided_slice %0 {offsets = [3, 0], sizes = [1, 32], strides = [1, 1]} : vector<11x32xf32> to vector<1x32xf32>
    %35 = vector.shape_cast %34 : vector<1x32xf32> to vector<32xf32>
    %36 = vector.shape_cast %35 : vector<32xf32> to vector<1x1x32xf32>
    %37 = vector.broadcast %36 : vector<1x1x32xf32> to vector<8x8x32xf32>
    %38 = arith.mulf %33, %37 : vector<8x8x32xf32>
    %39 = arith.addf %32, %38 : vector<8x8x32xf32>
    %40 = vector.extract_strided_slice %10 {offsets = [1, 1, 0], sizes = [8, 8, 32], strides = [1, 1, 1]} : vector<10x10x32xf32> to vector<8x8x32xf32>
    %41 = vector.extract_strided_slice %0 {offsets = [4, 0], sizes = [1, 32], strides = [1, 1]} : vector<11x32xf32> to vector<1x32xf32>
    %42 = vector.shape_cast %41 : vector<1x32xf32> to vector<32xf32>
    %43 = vector.shape_cast %42 : vector<32xf32> to vector<1x1x32xf32>
    %44 = vector.broadcast %43 : vector<1x1x32xf32> to vector<8x8x32xf32>
    %45 = arith.mulf %40, %44 : vector<8x8x32xf32>
    %46 = arith.addf %39, %45 : vector<8x8x32xf32>
    %47 = vector.extract_strided_slice %10 {offsets = [1, 2, 0], sizes = [8, 8, 32], strides = [1, 1, 1]} : vector<10x10x32xf32> to vector<8x8x32xf32>
    %48 = vector.extract_strided_slice %0 {offsets = [5, 0], sizes = [1, 32], strides = [1, 1]} : vector<11x32xf32> to vector<1x32xf32>
    %49 = vector.shape_cast %48 : vector<1x32xf32> to vector<32xf32>
    %50 = vector.shape_cast %49 : vector<32xf32> to vector<1x1x32xf32>
    %51 = vector.broadcast %50 : vector<1x1x32xf32> to vector<8x8x32xf32>
    %52 = arith.mulf %47, %51 : vector<8x8x32xf32>
    %53 = arith.addf %46, %52 : vector<8x8x32xf32>
    %54 = vector.extract_strided_slice %10 {offsets = [2, 0, 0], sizes = [8, 8, 32], strides = [1, 1, 1]} : vector<10x10x32xf32> to vector<8x8x32xf32>
    %55 = vector.extract_strided_slice %0 {offsets = [6, 0], sizes = [1, 32], strides = [1, 1]} : vector<11x32xf32> to vector<1x32xf32>
    %56 = vector.shape_cast %55 : vector<1x32xf32> to vector<32xf32>
    %57 = vector.shape_cast %56 : vector<32xf32> to vector<1x1x32xf32>
    %58 = vector.broadcast %57 : vector<1x1x32xf32> to vector<8x8x32xf32>
    %59 = arith.mulf %54, %58 : vector<8x8x32xf32>
    %60 = arith.addf %53, %59 : vector<8x8x32xf32>
    %61 = vector.extract_strided_slice %10 {offsets = [2, 1, 0], sizes = [8, 8, 32], strides = [1, 1, 1]} : vector<10x10x32xf32> to vector<8x8x32xf32>
    %62 = vector.extract_strided_slice %0 {offsets = [7, 0], sizes = [1, 32], strides = [1, 1]} : vector<11x32xf32> to vector<1x32xf32>
    %63 = vector.shape_cast %62 : vector<1x32xf32> to vector<32xf32>
    %64 = vector.shape_cast %63 : vector<32xf32> to vector<1x1x32xf32>
    %65 = vector.broadcast %64 : vector<1x1x32xf32> to vector<8x8x32xf32>
    %66 = arith.mulf %61, %65 : vector<8x8x32xf32>
    %67 = arith.addf %60, %66 : vector<8x8x32xf32>
    %68 = vector.extract_strided_slice %10 {offsets = [2, 2, 0], sizes = [8, 8, 32], strides = [1, 1, 1]} : vector<10x10x32xf32> to vector<8x8x32xf32>
    %69 = vector.extract_strided_slice %0 {offsets = [8, 0], sizes = [1, 32], strides = [1, 1]} : vector<11x32xf32> to vector<1x32xf32>
    %70 = vector.shape_cast %69 : vector<1x32xf32> to vector<32xf32>
    %71 = vector.shape_cast %70 : vector<32xf32> to vector<1x1x32xf32>
    %72 = vector.broadcast %71 : vector<1x1x32xf32> to vector<8x8x32xf32>
    %73 = arith.mulf %68, %72 : vector<8x8x32xf32>
    %74 = arith.addf %67, %73 : vector<8x8x32xf32>
    %75 = vector.shape_cast %74 : vector<8x8x32xf32> to vector<64x32xf32>
    %c0_17 = arith.constant 0 : index
    %c0_18 = arith.constant 0 : index
    %76 = vector.load %arg4[%c0_17, %c0_18] : memref<32x32xf32, #tpu.memory_space<vmem>>, vector<32x32xf32>
    %cst_19 = arith.constant dense<0.000000e+00> : vector<64x32xf32>
    %77 = tpu.matmul %75, %76, %cst_19 {dimension_numbers = #tpu.dot_dimension_numbers<[1], [0], [0], [1], [0, 0, 1, 1], [], []>} : vector<64x32xf32>, vector<32x32xf32>, vector<64x32xf32> -> vector<64x32xf32>
    %78 = vector.shape_cast %77 : vector<64x32xf32> to vector<1x64x32xf32>
    %cst_20 = arith.constant dense<0.000000e+00> : vector<1xf32>
    %79 = vector.multi_reduction <add>, %78, %cst_20 [1, 2] : vector<1x64x32xf32> to vector<1xf32>
    %80 = vector.shape_cast %79 : vector<1xf32> to vector<1x1x1xf32>
    %81 = vector.extract %80[0, 0, 0] : f32 from vector<1x1x1xf32>
    %cst_21 = arith.constant 4.8828125E-4 : f32
    %82 = arith.mulf %81, %cst_21 : f32
    %83 = arith.mulf %77, %77 : vector<64x32xf32>
    %84 = vector.shape_cast %83 : vector<64x32xf32> to vector<1x64x32xf32>
    %cst_22 = arith.constant dense<0.000000e+00> : vector<1xf32>
    %85 = vector.multi_reduction <add>, %84, %cst_22 [1, 2] : vector<1x64x32xf32> to vector<1xf32>
    %86 = vector.shape_cast %85 : vector<1xf32> to vector<1x1x1xf32>
    %87 = vector.extract %86[0, 0, 0] : f32 from vector<1x1x1xf32>
    %cst_23 = arith.constant 4.8828125E-4 : f32
    %88 = arith.mulf %87, %cst_23 : f32
    %89 = arith.mulf %82, %82 : f32
    %90 = arith.subf %88, %89 : f32
    %91 = vector.broadcast %82 : f32 to vector<64x32xf32>
    %92 = arith.subf %77, %91 : vector<64x32xf32>
    %cst_24 = arith.constant 9.99999974E-6 : f32
    %93 = arith.addf %90, %cst_24 : f32
    %94 = math.rsqrt %93 : f32
    %95 = vector.broadcast %94 : f32 to vector<64x32xf32>
    %96 = arith.mulf %92, %95 : vector<64x32xf32>
    %97 = vector.extract_strided_slice %0 {offsets = [9, 0], sizes = [1, 32], strides = [1, 1]} : vector<11x32xf32> to vector<1x32xf32>
    %98 = vector.broadcast %97 : vector<1x32xf32> to vector<64x32xf32>
    %99 = arith.mulf %96, %98 : vector<64x32xf32>
    %100 = vector.extract_strided_slice %0 {offsets = [10, 0], sizes = [1, 32], strides = [1, 1]} : vector<11x32xf32> to vector<1x32xf32>
    %101 = vector.broadcast %100 : vector<1x32xf32> to vector<64x32xf32>
    %102 = arith.addf %99, %101 : vector<64x32xf32>
    %c0_25 = arith.constant 0 : index
    %103 = memref.load %arg6[%c0_25] : memref<1xf32, #tpu.memory_space<smem>>
    %cst_26 = arith.constant 0.000000e+00 : f32
    %104 = vector.broadcast %cst_26 : f32 to vector<64x32xf32>
    %105 = arith.cmpf oge, %102, %104 : vector<64x32xf32>
    %106 = vector.broadcast %103 : f32 to vector<64x32xf32>
    %107 = arith.mulf %106, %102 : vector<64x32xf32>
    %108 = arith.select %105, %102, %107 : vector<64x32xi1>, vector<64x32xf32>
    %109 = vector.shape_cast %108 : vector<64x32xf32> to vector<8x8x32xf32>
    %c0_27 = arith.constant 0 : index
    %c0_28 = arith.constant 0 : index
    %c0_29 = arith.constant 0 : index
    %c0_30 = arith.constant 0 : index
    %110 = vector.load %arg2[%c0_27, %c0_28, %c0_29, %c0_30] : memref<1x8x8x32xf32, #tpu.memory_space<vmem>>, vector<1x8x8x32xf32>
    %111 = vector.shape_cast %110 : vector<1x8x8x32xf32> to vector<8x8x32xf32>
    %112 = arith.addf %109, %111 : vector<8x8x32xf32>
    %c0_31 = arith.constant 0 : index
    %c0_32 = arith.constant 0 : index
    %c0_33 = arith.constant 0 : index
    %c0_34 = arith.constant 0 : index
    %113 = vector.load %arg7[%c0_31, %c0_32, %c0_33, %c0_34] : memref<1x8x8x32xf32, #tpu.memory_space<vmem>>, vector<1x8x8x32xf32>
    %114 = vector.shape_cast %113 : vector<1x8x8x32xf32> to vector<8x8x32xf32>
    %115 = vector.shape_cast %112 : vector<8x8x32xf32> to vector<1x8x8x32xf32>
    tpu.vector_store %arg7[%c0_31, %c0_32, %c0_33, %c0_34], %115 {strides = array<i32>} : memref<1x8x8x32xf32, #tpu.memory_space<vmem>>, vector<1x8x8x32xf32>,
    return
  }
  func.func @transform_0(%arg0: i32) -> (i32, i32, i32, i32) {
    %c0_i32 = arith.constant 0 : i32
    %c0_i32_0 = arith.constant 0 : i32
    %c0_i32_1 = arith.constant 0 : i32
    %c0_i32_2 = arith.constant 0 : i32
    return %arg0, %c0_i32, %c0_i32_0, %c0_i32_1 : i32, i32, i32, i32
  }
  func.func @transform_1(%arg0: i32) -> (i32, i32, i32, i32) {
    %c0_i32 = arith.constant 0 : i32
    %c0_i32_0 = arith.constant 0 : i32
    %c0_i32_1 = arith.constant 0 : i32
    %c0_i32_2 = arith.constant 0 : i32
    return %arg0, %c0_i32, %c0_i32_0, %c0_i32_1 : i32, i32, i32, i32
  }
  func.func @transform_2(%arg0: i32) -> (i32, i32) {
    %c0_i32 = arith.constant 0 : i32
    %c0_i32_0 = arith.constant 0 : i32
    %c0_i32_1 = arith.constant 0 : i32
    return %c0_i32, %c0_i32_0 : i32, i32
  }
  func.func @transform_3(%arg0: i32) -> (i32, i32) {
    %c0_i32 = arith.constant 0 : i32
    %c0_i32_0 = arith.constant 0 : i32
    %c0_i32_1 = arith.constant 0 : i32
    return %c0_i32, %c0_i32_0 : i32, i32
  }
  func.func @transform_4(%arg0: i32) -> (i32, i32) {
    %c0_i32 = arith.constant 0 : i32
    %c0_i32_0 = arith.constant 0 : i32
    %c0_i32_1 = arith.constant 0 : i32
    return %c0_i32, %c0_i32_0 : i32, i32
  }
  func.func @transform_5(%arg0: i32) -> i32 {
    %c0_i32 = arith.constant 0 : i32
    %c0_i32_0 = arith.constant 0 : i32
    return %c0_i32 : i32
  }
  func.func @transform_6(%arg0: i32) -> (i32, i32, i32, i32) {
    %c0_i32 = arith.constant 0 : i32
    %c0_i32_0 = arith.constant 0 : i32
    %c0_i32_1 = arith.constant 0 : i32
    %c0_i32_2 = arith.constant 0 : i32
    return %arg0, %c0_i32, %c0_i32_0, %c0_i32_1 : i32, i32, i32, i32
  }
}

</mosaic_0001>

<llo_original>
// kernel: panel_forward.1
$region0: #{panel_forward.1}
  #allocation0 [shape = 'u32[]', space=smem, size = 0x4, offset = 0x4, fixed_abs, tag = 'smem constant byte address 0x4 - core index']
  #allocation1 [shape = 'u32[144,128]{1,0:T(1,128)}', space=vmem, size = 0x12000, scoped, tag = 'internal scratch']
  #allocation2 [shape = 'f32[10,10,32]{2,1,0:T(8,128)}', space=vmem, size = 0x14000, scoped, tag = 'scratch operand']
  #allocation3 [shape = 'f32[1]{0:T(128)S(6)}', space=smem, size = 0x200, scoped, tag = 'scoped memory for panel_forward.1']
  %s0 = inlined_call_operand.vmem [shape: f32[2,8,8,16], index: 0, kind: input, shape index: {}]
  %s1 = inlined_call_operand.vmem [shape: f32[2,8,8,32], index: 1, kind: input, shape index: {}]
  %s2 = inlined_call_operand.vmem [shape: f32[16,32], index: 2, kind: input, shape index: {}]
  %s3 = inlined_call_operand.vmem [shape: f32[32,32], index: 3, kind: input, shape index: {}]
  %s4 = inlined_call_operand.vmem [shape: f32[11,32], index: 4, kind: input, shape index: {}]
  %s5 = inlined_call_operand.<no memory space> [shape: f32[1], index: 5, kind: input, shape index: {}]
  %s6 = inlined_call_operand.vmem [shape: f32[2,8,8,32], index: 6, kind: output, shape index: {}]
  %s7 = sld [smem:[#allocation0]]
  $region57: #{panel_forward.1} parent=0
    _
  %s9 = ssub.s32 1, %s7
  %s10 = scalar_select 0, %s9, %s7
  %11 = sst [smem:[#allocation3]] %s5
  loop: start=0, step=1, limit=4
  $region2: #{panel_forward.1} parent=0 // loop_pre_header
    _
  $region3: #{panel_forward.1} parent=0 // loop_header
    %s13 = sphi 0, %s17
    %p14 = scmp.ge.s32.totalorder %s13, 4
    %s23 = sphi 0, %s25
    %s26 = sphi 0, %s23
    %s27 = sphi 0, %s26
    %s43 = sphi 0, %s27
    %s49 = sphi 0, %s51
    %s52 = sphi 0, %s49
    %s53 = sphi 0, %s52
    %s69 = sphi 0, %s53
    %s73 = sphi 0, %s73
    %s75 = sphi 0, %s73
    %s76 = sphi 0, %s75
    %s90 = sphi 0, %s76
    %s94 = sphi 0, %s94
    %s96 = sphi 0, %s94
    %s97 = sphi 0, %s96
    %s111 = sphi 0, %s97
    %s115 = sphi 0, %s115
    %s117 = sphi 0, %s115
    %s118 = sphi 0, %s117
    %s132 = sphi 0, %s118
    %s136 = sphi 0, %s136
    %s138 = sphi 0, %s136
    %s139 = sphi 0, %s138
    %s153 = sphi 0, %s139
    %s159 = sphi 0, %s161
    %s162 = sphi 0, %s159
    %s163 = sphi 0, %s162
    %s179 = sphi 0, %s163
  $region4: #{panel_forward.1} parent=0 // loop_header_branch
    %16 = sbr.rel (%p14) target = $region8
  $region5: #{panel_forward.1} parent=0 // loop_body
    %s18 = ssub.s32 %s13, 1
    %s19 = ssub.s32 %s13, 2
    %s20 = sadd.s32 %s13, 1
    %s21 = ssub.s32 %s13, %s20
    %p22 = scmp.eq.s32.totalorder %s21, 0
    %s24 = sadd.s32 %s23, 1
    %s25 = scalar_select %p22, %s23, %s24
    %p28 = pneg %p22
    %p29 = scmp.eq.s32.totalorder %s13, 1
    %p30 = por %p28, %p29
    %p31 = scmp.ne.s32.totalorder %s23, %s26
    %p32 = scmp.eq.s32.totalorder %s13, 0
    %p33 = por %p31, %p32
    %p34 = scmp.ne.s32.totalorder %s23, %s26
    %p35 = scmp.eq.s32.totalorder %s18, 1
    %p36 = por %p34, %p35
    %p37 = scmp.ne.s32.totalorder %s26, %s27
    %p38 = scmp.eq.s32.totalorder %s18, 0
    %p39 = por %p37, %p38
    %p40 = scmp.ne.s32.totalorder %s26, %s27
    %p41 = scmp.eq.s32.totalorder %s19, 1
    %p42 = por %p40, %p41
    %p44 = scmp.ne.s32.totalorder %s27, %s43
    %p45 = scmp.eq.s32.totalorder %s19, 0
    %p46 = por %p44, %p45
    %s47 = ssub.s32 %s13, %s20
    %p48 = scmp.eq.s32.totalorder %s47, 0
    %s50 = sadd.s32 %s49, 1
    %s51 = scalar_select %p48, %s49, %s50
    %p54 = pneg %p48
    %p55 = scmp.eq.s32.totalorder %s13, 1
    %p56 = por %p54, %p55
    %p57 = scmp.ne.s32.totalorder %s49, %s52
    %p58 = scmp.eq.s32.totalorder %s13, 0
    %p59 = por %p57, %p58
    %p60 = scmp.ne.s32.totalorder %s49, %s52
    %p61 = scmp.eq.s32.totalorder %s18, 1
    %p62 = por %p60, %p61
    %p63 = scmp.ne.s32.totalorder %s52, %s53
    %p64 = scmp.eq.s32.totalorder %s18, 0
    %p65 = por %p63, %p64
    %p66 = scmp.ne.s32.totalorder %s52, %s53
    %p67 = scmp.eq.s32.totalorder %s19, 1
    %p68 = por %p66, %p67
    %p70 = scmp.ne.s32.totalorder %s53, %s69
    %p71 = scmp.eq.s32.totalorder %s19, 0
    %p72 = por %p70, %p71
    %s74 = sadd.s32 %s73, 1
    %p77 = scmp.eq.s32.totalorder %s13, 1
    %p78 = scmp.ne.s32.totalorder %s73, %s75
    %p79 = scmp.eq.s32.totalorder %s13, 0
    %p80 = por %p78, %p79
    %p81 = scmp.ne.s32.totalorder %s73, %s75
    %p82 = scmp.eq.s32.totalorder %s18, 1
    %p83 = por %p81, %p82
    %p84 = scmp.ne.s32.totalorder %s75, %s76
    %p85 = scmp.eq.s32.totalorder %s18, 0
    %p86 = por %p84, %p85
    %p87 = scmp.ne.s32.totalorder %s75, %s76
    %p88 = scmp.eq.s32.totalorder %s19, 1
    %p89 = por %p87, %p88
    %p91 = scmp.ne.s32.totalorder %s76, %s90
    %p92 = scmp.eq.s32.totalorder %s19, 0
    %p93 = por %p91, %p92
    %s95 = sadd.s32 %s94, 1
    %p98 = scmp.eq.s32.totalorder %s13, 1
    %p99 = scmp.ne.s32.totalorder %s94, %s96
    %p100 = scmp.eq.s32.totalorder %s13, 0
    %p101 = por %p99, %p100
    %p102 = scmp.ne.s32.totalorder %s94, %s96
    %p103 = scmp.eq.s32.totalorder %s18, 1
    %p104 = por %p102, %p103
    %p105 = scmp.ne.s32.totalorder %s96, %s97
    %p106 = scmp.eq.s32.totalorder %s18, 0
    %p107 = por %p105, %p106
    %p108 = scmp.ne.s32.totalorder %s96, %s97
    %p109 = scmp.eq.s32.totalorder %s19, 1
    %p110 = por %p108, %p109
    %p112 = scmp.ne.s32.totalorder %s97, %s111
    %p113 = scmp.eq.s32.totalorder %s19, 0
    %p114 = por %p112, %p113
    %s116 = sadd.s32 %s115, 1
    %p119 = scmp.eq.s32.totalorder %s13, 1
    %p120 = scmp.ne.s32.totalorder %s115, %s117
    %p121 = scmp.eq.s32.totalorder %s13, 0
    %p122 = por %p120, %p121
    %p123 = scmp.ne.s32.totalorder %s115, %s117
    %p124 = scmp.eq.s32.totalorder %s18, 1
    %p125 = por %p123, %p124
    %p126 = scmp.ne.s32.totalorder %s117, %s118
    %p127 = scmp.eq.s32.totalorder %s18, 0
    %p128 = por %p126, %p127
    %p129 = scmp.ne.s32.totalorder %s117, %s118
    %p130 = scmp.eq.s32.totalorder %s19, 1
    %p131 = por %p129, %p130
    %p133 = scmp.ne.s32.totalorder %s118, %s132
    %p134 = scmp.eq.s32.totalorder %s19, 0
    %p135 = por %p133, %p134
    %s137 = sadd.s32 %s136, 1
    %p140 = scmp.eq.s32.totalorder %s13, 1
    %p141 = scmp.ne.s32.totalorder %s136, %s138
    %p142 = scmp.eq.s32.totalorder %s13, 0
    %p143 = por %p141, %p142
    %p144 = scmp.ne.s32.totalorder %s136, %s138
    %p145 = scmp.eq.s32.totalorder %s18, 1
    %p146 = por %p144, %p145
    %p147 = scmp.ne.s32.totalorder %s138, %s139
    %p148 = scmp.eq.s32.totalorder %s18, 0
    %p149 = por %p147, %p148
    %p150 = scmp.ne.s32.totalorder %s138, %s139
    %p151 = scmp.eq.s32.totalorder %s19, 1
    %p152 = por %p150, %p151
    %p154 = scmp.ne.s32.totalorder %s139, %s153
    %p155 = scmp.eq.s32.totalorder %s19, 0
    %p156 = por %p154, %p155
    %s157 = ssub.s32 %s13, %s20
    %p158 = scmp.eq.s32.totalorder %s157, 0
    %s160 = sadd.s32 %s159, 1
    %s161 = scalar_select %p158, %s159, %s160
    %p164 = pneg %p158
    %p165 = scmp.eq.s32.totalorder %s13, 1
    %p166 = por %p164, %p165
    %p167 = scmp.ne.s32.totalorder %s159, %s162
    %p168 = scmp.eq.s32.totalorder %s13, 0
    %p169 = por %p167, %p168
    %p170 = scmp.ne.s32.totalorder %s159, %s162
    %p171 = scmp.eq.s32.totalorder %s18, 1
    %p172 = por %p170, %p171
    %p173 = scmp.ne.s32.totalorder %s162, %s163
    %p174 = scmp.eq.s32.totalorder %s18, 0
    %p175 = por %p173, %p174
    %p176 = scmp.ne.s32.totalorder %s162, %s163
    %p177 = scmp.eq.s32.totalorder %s19, 1
    %p178 = por %p176, %p177
    %p180 = scmp.ne.s32.totalorder %s163, %s179
    %p181 = scmp.eq.s32.totalorder %s19, 0
    %p182 = por %p180, %p181
    %p183 = scmp.le.s32.totalorder 1, %s13
    %p184 = scmp.lt.s32.totalorder %s13, 3
    %p185 = pnand %p183, %p184
    %p186 = pneg %p185
    // Predicated region
    $region9: #{panel_forward.1} parent=5 // pred_check
      _
    $region10: #{panel_forward.1} parent=5 // pred_check_branch
      %188 = sbr.rel (%p185) target = $region12
    $region11: #{panel_forward.1} parent=5 // pred_region
      %s189 = ssub.s32 %s13, 1
      // Predicated region
      $region13: #{panel_forward.1} parent=11 // pred_check
        %p190 = pneg %p86
      $region14: #{panel_forward.1} parent=11 // pred_check_branch
        %192 = sbr.rel (%p190) target = $region16
      $region15: #{panel_forward.1} parent=11 // pred_region
        _
      $region16: #{panel_forward.1} parent=11 // pred_fallthru
        _
      // Predicated region
      $region17: #{panel_forward.1} parent=11 // pred_check
        %p193 = pneg %p107
      $region18: #{panel_forward.1} parent=11 // pred_check_branch
        %195 = sbr.rel (%p193) target = $region20
      $region19: #{panel_forward.1} parent=11 // pred_region
        _
      $region20: #{panel_forward.1} parent=11 // pred_fallthru
        _
      // Predicated region
      $region21: #{panel_forward.1} parent=11 // pred_check
        %p196 = pneg %p128
      $region22: #{panel_forward.1} parent=11 // pred_check_branch
        %198 = sbr.rel (%p196) target = $region24
      $region23: #{panel_forward.1} parent=11 // pred_region
        _
      $region24: #{panel_forward.1} parent=11 // pred_fallthru
        _
      // Predicated region
      $region25: #{panel_forward.1} parent=11 // pred_check
        %p199 = pneg %p149
      $region26: #{panel_forward.1} parent=11 // pred_check_branch
        %201 = sbr.rel (%p199) target = $region28
      $region27: #{panel_forward.1} parent=11 // pred_region
        _
      $region28: #{panel_forward.1} parent=11 // pred_fallthru
        _
    $region12: #{panel_forward.1} parent=5 // pred_fallthru
      _
    %p202 = scmp.lt.s32.totalorder %s13, 2
    // Predicated region
    $region29: #{panel_forward.1} parent=5 // pred_check
      %p203 = pneg %p202
    $region30: #{panel_forward.1} parent=5 // pred_check_branch
      %205 = sbr.rel (%p203) target = $region32
    $region31: #{panel_forward.1} parent=5 // pred_region
      // Predicated region
      $region33: #{panel_forward.1} parent=31 // pred_check
        %p206 = pneg %p33
      $region34: #{panel_forward.1} parent=31 // pred_check_branch
        %208 = sbr.rel (%p206) target = $region36
      $region35: #{panel_forward.1} parent=31 // pred_region
        %p209 = scmp.lt.s32.totalorder %s13, 1
        %s210 = scalar_select %p209, %s13, 1
        %s211 = smul.addr %s210, 8
        %s212 = smul.addr %s211, 8
        %s213 = scalar_lea.vmem %s0, %s212
      $region36: #{panel_forward.1} parent=31 // pred_fallthru
        _
      // Predicated region
      $region37: #{panel_forward.1} parent=31 // pred_check
        %p214 = pneg %p59
      $region38: #{panel_forward.1} parent=31 // pred_check_branch
        %216 = sbr.rel (%p214) target = $region40
      $region39: #{panel_forward.1} parent=31 // pred_region
        %p217 = scmp.lt.s32.totalorder %s13, 1
        %s218 = scalar_select %p217, %s13, 1
        %s219 = smul.addr %s218, 8
        %s220 = smul.addr %s219, 8
        %s221 = scalar_lea.vmem %s1, %s220
      $region40: #{panel_forward.1} parent=31 // pred_fallthru
        _
    $region32: #{panel_forward.1} parent=5 // pred_fallthru
      _
    %p222 = scmp.le.s32.totalorder 1, %s13
    %p223 = scmp.lt.s32.totalorder %s13, 3
    %p224 = pnand %p222, %p223
    %p225 = pneg %p224
    // Predicated region
    $region41: #{panel_forward.1} parent=5 // pred_check
      _
    $region42: #{panel_forward.1} parent=5 // pred_check_branch
      %227 = sbr.rel (%p224) target = $region44
    $region43: #{panel_forward.1} parent=5 // pred_region
      %s228 = ssub.s32 %s13, 1
      %p229 = scmp.lt.s32.totalorder %s18, 1
      %s230 = scalar_select %p229, %s18, 1
      %s231 = smul.addr %s230, 8
      %s232 = smul.addr %s231, 8
      %s233 = scalar_lea.vmem %s0, %s232
      %p234 = pneg %p39
      %p235 = pneg %p36
      %p236 = scmp.lt.s32.totalorder %s18, 1
      %s237 = scalar_select %p236, %s18, 1
      %s238 = smul.addr %s237, 8
      %s239 = smul.addr %s238, 8
      %s240 = scalar_lea.vmem %s1, %s239
      %p241 = pneg %p65
      %p242 = pneg %p62
      %p243 = pneg %p86
      %p244 = pneg %p83
      %p245 = pneg %p107
      %p246 = pneg %p104
      %p247 = pneg %p128
      %p248 = pneg %p125
      %p249 = pneg %p149
      %p250 = pneg %p146
      %p251 = pneg %p175
      %p252 = pneg %p172
      %p253 = scmp.lt.s32.totalorder %s18, 1
      %s254 = scalar_select %p253, %s18, 1
      %s255 = smul.addr %s254, 8
      %s256 = smul.addr %s255, 8
      %s257 = scalar_lea.vmem %s6, %s256
      %p258 = scmp.lt.s32.totalorder %s18, 1
      %s259 = scalar_select %p258, %s18, 1
      %s260 = smul.addr %s259, 8
      %s261 = smul.addr %s260, 8
      %s262 = scalar_lea.vmem %s0, %s261
      %p263 = scmp.lt.s32.totalorder %s18, 1
      %s264 = scalar_select %p263, %s18, 1
      %s265 = smul.addr %s264, 8
      %s266 = smul.addr %s265, 8
      %s267 = scalar_lea.vmem %s1, %s266
      %p268 = scmp.lt.s32.totalorder %s18, 1
      %s269 = scalar_select %p268, %s18, 1
      %s270 = smul.addr %s269, 8
      %s271 = smul.addr %s270, 8
      %s272 = scalar_lea.vmem %s6, %s271
      %v273 = vld [vmem:[%s4] sm:$0xff]
      %v274 = vld [vmem:[%s4 + $0x8] sm:$0x7]
      %v275 = vld [vmem:[%s262] sm:$0xff]
      %v276 = vld [vmem:[%s262 + $0x8] sm:$0xff]
      %v277 = vld [vmem:[%s262 + $0x10] sm:$0xff]
      %v278 = vld [vmem:[%s262 + $0x18] sm:$0xff]
      %v279 = vld [vmem:[%s262 + $0x20] sm:$0xff]
      %v280 = vld [vmem:[%s262 + $0x28] sm:$0xff]
      %v281 = vld [vmem:[%s262 + $0x30] sm:$0xff]
      %v282 = vld [vmem:[%s262 + $0x38] sm:$0xff]
      %v283 = vld [vmem:[%s2] sm:$0xff]
      %v284 = vld [vmem:[%s2 + $0x8] sm:$0xff]
      %vm285 = vcmask 130048
      %v287 = vsel %vm285, %v275, 0
      %v290 = vsel %vm285, %v276, 0
      %v293 = vsel %vm285, %v277, 0
      %v296 = vsel %vm285, %v278, 0
      %v299 = vsel %vm285, %v279, 0
      %v302 = vsel %vm285, %v280, 0
      %v305 = vsel %vm285, %v281, 0
      %v308 = vsel %vm285, %v282, 0
      %310 = vmatprep.subr.mxu0 0.0
      %311 = vmatpush1.msra.mxu0 0.0
      %312 = vmatprep.subr.mxu0 0.0
      %313 = vmatpush1.msra.mxu0 0.0
      %314 = vmatprep.subr.mxu0 0.0
      %315 = vmatpush1.msra.mxu0 0.0
      %316 = vmatprep.subr.mxu0 0.0
      %317 = vmatpush1.msra.mxu0 0.0
      %318 = vmatprep.subr.mxu0 0.0
      %319 = vmatpush1.msra.mxu0 0.0
      %320 = vmatprep.subr.mxu0 0.0
      %321 = vmatpush1.msra.mxu0 0.0
      %322 = vmatprep.subr.mxu0 0.0
      %323 = vmatpush1.msra.mxu0 0.0
      %324 = vmatprep.subr.mxu0 0.0
      %325 = vmatpush1.msra.mxu0 0.0
      %326 = vmatprep.subr.mxu0 0.0
      %327 = vmatpush1.msra.mxu0 0.0
      %328 = vmatprep.subr.mxu0 0.0
      %329 = vmatpush1.msra.mxu0 0.0
      %330 = vmatprep.subr.mxu0 0.0
      %331 = vmatpush1.msra.mxu0 0.0
      %332 = vmatprep.subr.mxu0 0.0
      %333 = vmatpush1.msra.mxu0 0.0
      %334 = vmatprep.subr.mxu0 0.0
      %335 = vmatpush1.msra.mxu0 0.0
      %336 = vmatprep.subr.mxu0 0.0
      %337 = vmatpush1.msra.mxu0 0.0
      %338 = vmatprep.subr.mxu0 0.0
      %339 = vmatpush1.msra.mxu0 %v284
      %340 = vmatprep.subr.mxu0 0.0
      %341 = vmatpush1.msra.mxu0 %v283
      %342 = vmatprep.subr.mxu0 0.0
      %343 = vmatpush2.msra.mxu0 0.0
      %344 = vmatprep.subr.mxu0 0.0
      %345 = vmatpush2.msra.mxu0 0.0
      %346 = vmatprep.subr.mxu0 0.0
      %347 = vmatpush2.msra.mxu0 0.0
      %348 = vmatprep.subr.mxu0 0.0
      %349 = vmatpush2.msra.mxu0 0.0
      %350 = vmatprep.subr.mxu0 0.0
      %351 = vmatpush2.msra.mxu0 0.0
      %352 = vmatprep.subr.mxu0 0.0
      %353 = vmatpush2.msra.mxu0 0.0
      %354 = vmatprep.subr.mxu0 0.0
      %355 = vmatpush2.msra.mxu0 0.0
      %356 = vmatprep.subr.mxu0 0.0
      %357 = vmatpush2.msra.mxu0 0.0
      %358 = vmatprep.subr.mxu0 0.0
      %359 = vmatpush2.msra.mxu0 0.0
      %360 = vmatprep.subr.mxu0 0.0
      %361 = vmatpush2.msra.mxu0 0.0
      %362 = vmatprep.subr.mxu0 0.0
      %363 = vmatpush2.msra.mxu0 0.0
      %364 = vmatprep.subr.mxu0 0.0
      %365 = vmatpush2.msra.mxu0 0.0
      %366 = vmatprep.subr.mxu0 0.0
      %367 = vmatpush2.msra.mxu0 0.0
      %368 = vmatprep.subr.mxu0 0.0
      %369 = vmatpush2.msra.mxu0 0.0
      %370 = vmatprep.subr.mxu0 0.0
      %371 = vmatpush2.msra.mxu0 0.0
      %372 = vmatprep.subr.mxu0 0.0
      %373 = vmatpush2.msra.mxu0 0.0
      %374 = vmatprep.mubr.f32.mxu0 0.0
      %375 = vmatmul.mubr.f32.gmra.mxu0 %v287
      %v376 = vpop.f32.mrf.mxu0
      %v377 = vadd.f32 0.0, %v376
      %v378 = vpop.f32.mrf.mxu0
      %379 = vmatprep.mubr.f32.mxu0 0.0
      %380 = vmatmul.mubr.f32.gmra.mxu0 %v290
      %v381 = vpop.f32.mrf.mxu0
      %v382 = vadd.f32 0.0, %v381
      %v383 = vpop.f32.mrf.mxu0
      %384 = vmatprep.mubr.f32.mxu0 0.0
      %385 = vmatmul.mubr.f32.gmra.mxu0 %v293
      %v386 = vpop.f32.mrf.mxu0
      %v387 = vadd.f32 0.0, %v386
      %v388 = vpop.f32.mrf.mxu0
      %389 = vmatprep.mubr.f32.mxu0 0.0
      %390 = vmatmul.mubr.f32.gmra.mxu0 %v296
      %v391 = vpop.f32.mrf.mxu0
      %v392 = vadd.f32 0.0, %v391
      %v393 = vpop.f32.mrf.mxu0
      %394 = vmatprep.mubr.f32.mxu0 0.0
      %395 = vmatmul.mubr.f32.gmra.mxu0 %v299
      %v396 = vpop.f32.mrf.mxu0
      %v397 = vadd.f32 0.0, %v396
      %v398 = vpop.f32.mrf.mxu0
      %399 = vmatprep.mubr.f32.mxu0 0.0
      %400 = vmatmul.mubr.f32.gmra.mxu0 %v302
      %v401 = vpop.f32.mrf.mxu0
      %v402 = vadd.f32 0.0, %v401
      %v403 = vpop.f32.mrf.mxu0
      %404 = vmatprep.mubr.f32.mxu0 0.0
      %405 = vmatmul.mubr.f32.gmra.mxu0 %v305
      %v406 = vpop.f32.mrf.mxu0
      %v407 = vadd.f32 0.0, %v406
      %v408 = vpop.f32.mrf.mxu0
      %409 = vmatprep.mubr.f32.mxu0 0.0
      %410 = vmatmul.mubr.f32.gmra.mxu0 %v308
      %v411 = vpop.f32.mrf.mxu0
      %v412 = vadd.f32 0.0, %v411
      %v413 = vpop.f32.mrf.mxu0
      %414 = vdwg.mxu0
      %vm415 = vcmask 261120
      %416 = vst.msk [vmem:[#allocation2] sm:$0xff] %vm415, 0.0
      %vm417 = vcmask 254976
      %418 = vst.msk [vmem:[#allocation2 + $0x8] sm:$0x3] %vm417, 0.0
      %419 = vst.msk [vmem:[#allocation2 + $0x10] sm:$0xff] %vm415, 0.0
      %420 = vst.msk [vmem:[#allocation2 + $0x18] sm:$0x3] %vm417, 0.0
      %421 = vst.msk [vmem:[#allocation2 + $0x20] sm:$0xff] %vm415, 0.0
      %422 = vst.msk [vmem:[#allocation2 + $0x28] sm:$0x3] %vm417, 0.0
      %423 = vst.msk [vmem:[#allocation2 + $0x30] sm:$0xff] %vm415, 0.0
      %424 = vst.msk [vmem:[#allocation2 + $0x38] sm:$0x3] %vm417, 0.0
      %425 = vst.msk [vmem:[#allocation2 + $0x40] sm:$0xff] %vm415, 0.0
      %426 = vst.msk [vmem:[#allocation2 + $0x48] sm:$0x3] %vm417, 0.0
      %427 = vst.msk [vmem:[#allocation2 + $0x50] sm:$0xff] %vm415, 0.0
      %428 = vst.msk [vmem:[#allocation2 + $0x58] sm:$0x3] %vm417, 0.0
      %429 = vst.msk [vmem:[#allocation2 + $0x60] sm:$0xff] %vm415, 0.0
      %430 = vst.msk [vmem:[#allocation2 + $0x68] sm:$0x3] %vm417, 0.0
      %431 = vst.msk [vmem:[#allocation2 + $0x70] sm:$0xff] %vm415, 0.0
      %432 = vst.msk [vmem:[#allocation2 + $0x78] sm:$0x3] %vm417, 0.0
      %433 = vst.msk [vmem:[#allocation2 + $0x80] sm:$0xff] %vm415, 0.0
      %434 = vst.msk [vmem:[#allocation2 + $0x88] sm:$0x3] %vm417, 0.0
      %435 = vst.msk [vmem:[#allocation2 + $0x90] sm:$0xff] %vm415, 0.0
      %436 = vst.msk [vmem:[#allocation2 + $0x98] sm:$0x3] %vm417, 0.0
      %s437 = scalar_lea.vmem [#allocation2], 16
      %438 = vst.msk [vmem:[%s437 + $0x1] sm:$0xff] %vm415, %v377
      %439 = vst.msk [vmem:[%s437 + $0x11] sm:$0xff] %vm415, %v382
      %440 = vst.msk [vmem:[%s437 + $0x21] sm:$0xff] %vm415, %v387
      %441 = vst.msk [vmem:[%s437 + $0x31] sm:$0xff] %vm415, %v392
      %442 = vst.msk [vmem:[%s437 + $0x41] sm:$0xff] %vm415, %v397
      %443 = vst.msk [vmem:[%s437 + $0x51] sm:$0xff] %vm415, %v402
      %444 = vst.msk [vmem:[%s437 + $0x61] sm:$0xff] %vm415, %v407
      %445 = vst.msk [vmem:[%s437 + $0x71] sm:$0xff] %vm415, %v412
      %v446 = vld [vmem:[#allocation2] sm:$0xff]
      %v447 = vld [vmem:[#allocation2 + $0x8] sm:$0x3]
      %v448 = vld [vmem:[#allocation2 + $0x10] sm:$0xff]
      %v449 = vld [vmem:[#allocation2 + $0x18] sm:$0x3]
      %v450 = vld [vmem:[#allocation2 + $0x20] sm:$0xff]
      %v451 = vld [vmem:[#allocation2 + $0x28] sm:$0x3]
      %v452 = vld [vmem:[#allocation2 + $0x30] sm:$0xff]
      %v453 = vld [vmem:[#allocation2 + $0x38] sm:$0x3]
      %v454 = vld [vmem:[#allocation2 + $0x40] sm:$0xff]
      %v455 = vld [vmem:[#allocation2 + $0x48] sm:$0x3]
      %v456 = vld [vmem:[#allocation2 + $0x50] sm:$0xff]
      %v457 = vld [vmem:[#allocation2 + $0x58] sm:$0x3]
      %v458 = vld [vmem:[#allocation2 + $0x60] sm:$0xff]
      %v459 = vld [vmem:[#allocation2 + $0x68] sm:$0x3]
      %v460 = vld [vmem:[#allocation2 + $0x70] sm:$0xff]
      %v461 = vld [vmem:[#allocation2 + $0x78] sm:$0x3]
      %v462 = vld [vmem:[#allocation2 + $0x80] sm:$0xff]
      %v463 = vld [vmem:[#allocation2 + $0x88] sm:$0x3]
      %v464 = vld [vmem:[#allocation2 + $0x90] sm:$0xff]
      %v465 = vld [vmem:[#allocation2 + $0x98] sm:$0x3]
      %v466 = vlaneseq
      %v467 = vshrl.u32 %v466, 7
      %v468 = vsub.s32 0, %v467
      %v469 = vrot.slane %v273, %v468
      %v470 = vmul.f32 %v446, %v469
      %v471 = vmul.f32 %v448, %v469
      %v472 = vmul.f32 %v450, %v469
      %v473 = vmul.f32 %v452, %v469
      %v474 = vmul.f32 %v454, %v469
      %v475 = vmul.f32 %v456, %v469
      %v476 = vmul.f32 %v458, %v469
      %v477 = vmul.f32 %v460, %v469
      %v478 = vadd.f32 %v470, 0.0
      %v479 = vadd.f32 %v471, 0.0
      %v480 = vadd.f32 %v472, 0.0
      %v481 = vadd.f32 %v473, 0.0
      %v482 = vadd.f32 %v474, 0.0
      %v483 = vadd.f32 %v475, 0.0
      %v484 = vadd.f32 %v476, 0.0
      %v485 = vadd.f32 %v477, 0.0
      %v486 = vlaneseq
      %v487 = vshrl.u32 %v486, 7
      %v488 = vsub.s32 1, %v487
      %v489 = vrot.slane %v273, %v488
      %v490 = vmul.f32 %v446, %v489
      %v491 = vmul.f32 %v447, %v489
      %v492 = vmul.f32 %v448, %v489
      %v493 = vmul.f32 %v449, %v489
      %v494 = vmul.f32 %v450, %v489
      %v495 = vmul.f32 %v451, %v489
      %v496 = vmul.f32 %v452, %v489
      %v497 = vmul.f32 %v453, %v489
      %v498 = vmul.f32 %v454, %v489
      %v499 = vmul.f32 %v455, %v489
      %v500 = vmul.f32 %v456, %v489
      %v501 = vmul.f32 %v457, %v489
      %v502 = vmul.f32 %v458, %v489
      %v503 = vmul.f32 %v459, %v489
      %v504 = vmul.f32 %v460, %v489
      %v505 = vmul.f32 %v461, %v489
      %vm522 = vcmask 1046528
      %v523 = vrot.slane %v490, 1
      %v524 = vrot.slane %v491, 1
      %v525 = vsel %vm522, %v523, %v524
      %v526 = vrot.slane %v492, 1
      %v527 = vrot.slane %v493, 1
      %v528 = vsel %vm522, %v526, %v527
      %v529 = vrot.slane %v494, 1
      %v530 = vrot.slane %v495, 1
      %v531 = vsel %vm522, %v529, %v530
      %v532 = vrot.slane %v496, 1
      %v533 = vrot.slane %v497, 1
      %v534 = vsel %vm522, %v532, %v533
      %v535 = vrot.slane %v498, 1
      %v536 = vrot.slane %v499, 1
      %v537 = vsel %vm522, %v535, %v536
      %v538 = vrot.slane %v500, 1
      %v539 = vrot.slane %v501, 1
      %v540 = vsel %vm522, %v538, %v539
      %v541 = vrot.slane %v502, 1
      %v542 = vrot.slane %v503, 1
      %v543 = vsel %vm522, %v541, %v542
      %v544 = vrot.slane %v504, 1
      %v545 = vrot.slane %v505, 1
      %v546 = vsel %vm522, %v544, %v545
      %v555 = vadd.f32 %v478, %v525
      %v556 = vadd.f32 %v479, %v528
      %v557 = vadd.f32 %v480, %v531
      %v558 = vadd.f32 %v481, %v534
      %v559 = vadd.f32 %v482, %v537
      %v560 = vadd.f32 %v483, %v540
      %v561 = vadd.f32 %v484, %v543
      %v562 = vadd.f32 %v485, %v546
      %v563 = vlaneseq
      %v564 = vshrl.u32 %v563, 7
      %v565 = vsub.s32 2, %v564
      %v566 = vrot.slane %v273, %v565
      %v567 = vmul.f32 %v446, %v566
      %v568 = vmul.f32 %v447, %v566
      %v569 = vmul.f32 %v448, %v566
      %v570 = vmul.f32 %v449, %v566
      %v571 = vmul.f32 %v450, %v566
      %v572 = vmul.f32 %v451, %v566
      %v573 = vmul.f32 %v452, %v566
      %v574 = vmul.f32 %v453, %v566
      %v575 = vmul.f32 %v454, %v566
      %v576 = vmul.f32 %v455, %v566
      %v577 = vmul.f32 %v456, %v566
      %v578 = vmul.f32 %v457, %v566
      %v579 = vmul.f32 %v458, %v566
      %v580 = vmul.f32 %v459, %v566
      %v581 = vmul.f32 %v460, %v566
      %v582 = vmul.f32 %v461, %v566
      %vm599 = vcmask 1045504
      %v600 = vrot.slane %v567, 2
      %v601 = vrot.slane %v568, 2
      %v602 = vsel %vm599, %v600, %v601
      %v603 = vrot.slane %v569, 2
      %v604 = vrot.slane %v570, 2
      %v605 = vsel %vm599, %v603, %v604
      %v606 = vrot.slane %v571, 2
      %v607 = vrot.slane %v572, 2
      %v608 = vsel %vm599, %v606, %v607
      %v609 = vrot.slane %v573, 2
      %v610 = vrot.slane %v574, 2
      %v611 = vsel %vm599, %v609, %v610
      %v612 = vrot.slane %v575, 2
      %v613 = vrot.slane %v576, 2
      %v614 = vsel %vm599, %v612, %v613
      %v615 = vrot.slane %v577, 2
      %v616 = vrot.slane %v578, 2
      %v617 = vsel %vm599, %v615, %v616
      %v618 = vrot.slane %v579, 2
      %v619 = vrot.slane %v580, 2
      %v620 = vsel %vm599, %v618, %v619
      %v621 = vrot.slane %v581, 2
      %v622 = vrot.slane %v582, 2
      %v623 = vsel %vm599, %v621, %v622
      %v632 = vadd.f32 %v555, %v602
      %v633 = vadd.f32 %v556, %v605
      %v634 = vadd.f32 %v557, %v608
      %v635 = vadd.f32 %v558, %v611
      %v636 = vadd.f32 %v559, %v614
      %v637 = vadd.f32 %v560, %v617
      %v638 = vadd.f32 %v561, %v620
      %v639 = vadd.f32 %v562, %v623
      %v640 = vlaneseq
      %v641 = vshrl.u32 %v640, 7
      %v642 = vsub.s32 3, %v641
      %v643 = vrot.slane %v273, %v642
      %v644 = vmul.f32 %v448, %v643
      %v645 = vmul.f32 %v450, %v643
      %v646 = vmul.f32 %v452, %v643
      %v647 = vmul.f32 %v454, %v643
      %v648 = vmul.f32 %v456, %v643
      %v649 = vmul.f32 %v458, %v643
      %v650 = vmul.f32 %v460, %v643
      %v651 = vmul.f32 %v462, %v643
      %v652 = vadd.f32 %v632, %v644
      %v653 = vadd.f32 %v633, %v645
      %v654 = vadd.f32 %v634, %v646
      %v655 = vadd.f32 %v635, %v647
      %v656 = vadd.f32 %v636, %v648
      %v657 = vadd.f32 %v637, %v649
      %v658 = vadd.f32 %v638, %v650
      %v659 = vadd.f32 %v639, %v651
      %v660 = vlaneseq
      %v661 = vshrl.u32 %v660, 7
      %v662 = vsub.s32 4, %v661
      %v663 = vrot.slane %v273, %v662
      %v664 = vmul.f32 %v448, %v663
      %v665 = vmul.f32 %v449, %v663
      %v666 = vmul.f32 %v450, %v663
      %v667 = vmul.f32 %v451, %v663
      %v668 = vmul.f32 %v452, %v663
      %v669 = vmul.f32 %v453, %v663
      %v670 = vmul.f32 %v454, %v663
      %v671 = vmul.f32 %v455, %v663
      %v672 = vmul.f32 %v456, %v663
      %v673 = vmul.f32 %v457, %v663
      %v674 = vmul.f32 %v458, %v663
      %v675 = vmul.f32 %v459, %v663
      %v676 = vmul.f32 %v460, %v663
      %v677 = vmul.f32 %v461, %v663
      %v678 = vmul.f32 %v462, %v663
      %v679 = vmul.f32 %v463, %v663
      %v696 = vrot.slane %v664, 1
      %v697 = vrot.slane %v665, 1
      %v698 = vsel %vm522, %v696, %v697
      %v699 = vrot.slane %v666, 1
      %v700 = vrot.slane %v667, 1
      %v701 = vsel %vm522, %v699, %v700
      %v702 = vrot.slane %v668, 1
      %v703 = vrot.slane %v669, 1
      %v704 = vsel %vm522, %v702, %v703
      %v705 = vrot.slane %v670, 1
      %v706 = vrot.slane %v671, 1
      %v707 = vsel %vm522, %v705, %v706
      %v708 = vrot.slane %v672, 1
      %v709 = vrot.slane %v673, 1
      %v710 = vsel %vm522, %v708, %v709
      %v711 = vrot.slane %v674, 1
      %v712 = vrot.slane %v675, 1
      %v713 = vsel %vm522, %v711, %v712
      %v714 = vrot.slane %v676, 1
      %v715 = vrot.slane %v677, 1
      %v716 = vsel %vm522, %v714, %v715
      %v717 = vrot.slane %v678, 1
      %v718 = vrot.slane %v679, 1
      %v719 = vsel %vm522, %v717, %v718
      %v728 = vadd.f32 %v652, %v698
      %v729 = vadd.f32 %v653, %v701
      %v730 = vadd.f32 %v654, %v704
      %v731 = vadd.f32 %v655, %v707
      %v732 = vadd.f32 %v656, %v710
      %v733 = vadd.f32 %v657, %v713
      %v734 = vadd.f32 %v658, %v716
      %v735 = vadd.f32 %v659, %v719
      %v736 = vlaneseq
      %v737 = vshrl.u32 %v736, 7
      %v738 = vsub.s32 5, %v737
      %v739 = vrot.slane %v273, %v738
      %v740 = vmul.f32 %v448, %v739
      %v741 = vmul.f32 %v449, %v739
      %v742 = vmul.f32 %v450, %v739
      %v743 = vmul.f32 %v451, %v739
      %v744 = vmul.f32 %v452, %v739
      %v745 = vmul.f32 %v453, %v739
      %v746 = vmul.f32 %v454, %v739
      %v747 = vmul.f32 %v455, %v739
      %v748 = vmul.f32 %v456, %v739
      %v749 = vmul.f32 %v457, %v739
      %v750 = vmul.f32 %v458, %v739
      %v751 = vmul.f32 %v459, %v739
      %v752 = vmul.f32 %v460, %v739
      %v753 = vmul.f32 %v461, %v739
      %v754 = vmul.f32 %v462, %v739
      %v755 = vmul.f32 %v463, %v739
      %v772 = vrot.slane %v740, 2
      %v773 = vrot.slane %v741, 2
      %v774 = vsel %vm599, %v772, %v773
      %v775 = vrot.slane %v742, 2
      %v776 = vrot.slane %v743, 2
      %v777 = vsel %vm599, %v775, %v776
      %v778 = vrot.slane %v744, 2
      %v779 = vrot.slane %v745, 2
      %v780 = vsel %vm599, %v778, %v779
      %v781 = vrot.slane %v746, 2
      %v782 = vrot.slane %v747, 2
      %v783 = vsel %vm599, %v781, %v782
      %v784 = vrot.slane %v748, 2
      %v785 = vrot.slane %v749, 2
      %v786 = vsel %vm599, %v784, %v785
      %v787 = vrot.slane %v750, 2
      %v788 = vrot.slane %v751, 2
      %v789 = vsel %vm599, %v787, %v788
      %v790 = vrot.slane %v752, 2
      %v791 = vrot.slane %v753, 2
      %v792 = vsel %vm599, %v790, %v791
      %v793 = vrot.slane %v754, 2
      %v794 = vrot.slane %v755, 2
      %v795 = vsel %vm599, %v793, %v794
      %v804 = vadd.f32 %v728, %v774
      %v805 = vadd.f32 %v729, %v777
      %v806 = vadd.f32 %v730, %v780
      %v807 = vadd.f32 %v731, %v783
      %v808 = vadd.f32 %v732, %v786
      %v809 = vadd.f32 %v733, %v789
      %v810 = vadd.f32 %v734, %v792
      %v811 = vadd.f32 %v735, %v795
      %v812 = vlaneseq
      %v813 = vshrl.u32 %v812, 7
      %v814 = vsub.s32 6, %v813
      %v815 = vrot.slane %v273, %v814
      %v816 = vmul.f32 %v450, %v815
      %v817 = vmul.f32 %v452, %v815
      %v818 = vmul.f32 %v454, %v815
      %v819 = vmul.f32 %v456, %v815
      %v820 = vmul.f32 %v458, %v815
      %v821 = vmul.f32 %v460, %v815
      %v822 = vmul.f32 %v462, %v815
      %v823 = vmul.f32 %v464, %v815
      %v824 = vadd.f32 %v804, %v816
      %v825 = vadd.f32 %v805, %v817
      %v826 = vadd.f32 %v806, %v818
      %v827 = vadd.f32 %v807, %v819
      %v828 = vadd.f32 %v808, %v820
      %v829 = vadd.f32 %v809, %v821
      %v830 = vadd.f32 %v810, %v822
      %v831 = vadd.f32 %v811, %v823
      %v832 = vlaneseq
      %v833 = vshrl.u32 %v832, 7
      %v834 = vsub.s32 7, %v833
      %v835 = vrot.slane %v273, %v834
      %v836 = vmul.f32 %v450, %v835
      %v837 = vmul.f32 %v451, %v835
      %v838 = vmul.f32 %v452, %v835
      %v839 = vmul.f32 %v453, %v835
      %v840 = vmul.f32 %v454, %v835
      %v841 = vmul.f32 %v455, %v835
      %v842 = vmul.f32 %v456, %v835
      %v843 = vmul.f32 %v457, %v835
      %v844 = vmul.f32 %v458, %v835
      %v845 = vmul.f32 %v459, %v835
      %v846 = vmul.f32 %v460, %v835
      %v847 = vmul.f32 %v461, %v835
      %v848 = vmul.f32 %v462, %v835
      %v849 = vmul.f32 %v463, %v835
      %v850 = vmul.f32 %v464, %v835
      %v851 = vmul.f32 %v465, %v835
      %v868 = vrot.slane %v836, 1
      %v869 = vrot.slane %v837, 1
      %v870 = vsel %vm522, %v868, %v869
      %v871 = vrot.slane %v838, 1
      %v872 = vrot.slane %v839, 1
      %v873 = vsel %vm522, %v871, %v872
      %v874 = vrot.slane %v840, 1
      %v875 = vrot.slane %v841, 1
      %v876 = vsel %vm522, %v874, %v875
      %v877 = vrot.slane %v842, 1
      %v878 = vrot.slane %v843, 1
      %v879 = vsel %vm522, %v877, %v878
      %v880 = vrot.slane %v844, 1
      %v881 = vrot.slane %v845, 1
      %v882 = vsel %vm522, %v880, %v881
      %v883 = vrot.slane %v846, 1
      %v884 = vrot.slane %v847, 1
      %v885 = vsel %vm522, %v883, %v884
      %v886 = vrot.slane %v848, 1
      %v887 = vrot.slane %v849, 1
      %v888 = vsel %vm522, %v886, %v887
      %v889 = vrot.slane %v850, 1
      %v890 = vrot.slane %v851, 1
      %v891 = vsel %vm522, %v889, %v890
      %v900 = vadd.f32 %v824, %v870
      %v901 = vadd.f32 %v825, %v873
      %v902 = vadd.f32 %v826, %v876
      %v903 = vadd.f32 %v827, %v879
      %v904 = vadd.f32 %v828, %v882
      %v905 = vadd.f32 %v829, %v885
      %v906 = vadd.f32 %v830, %v888
      %v907 = vadd.f32 %v831, %v891
      %v908 = vlaneseq
      %v909 = vshrl.u32 %v908, 7
      %v910 = vsub.s32 0, %v909
      %v911 = vrot.slane %v274, %v910
      %v912 = vmul.f32 %v450, %v911
      %v913 = vmul.f32 %v451, %v911
      %v914 = vmul.f32 %v452, %v911
      %v915 = vmul.f32 %v453, %v911
      %v916 = vmul.f32 %v454, %v911
      %v917 = vmul.f32 %v455, %v911
      %v918 = vmul.f32 %v456, %v911
      %v919 = vmul.f32 %v457, %v911
      %v920 = vmul.f32 %v458, %v911
      %v921 = vmul.f32 %v459, %v911
      %v922 = vmul.f32 %v460, %v911
      %v923 = vmul.f32 %v461, %v911
      %v924 = vmul.f32 %v462, %v911
      %v925 = vmul.f32 %v463, %v911
      %v926 = vmul.f32 %v464, %v911
      %v927 = vmul.f32 %v465, %v911
      %v944 = vrot.slane %v912, 2
      %v945 = vrot.slane %v913, 2
      %v946 = vsel %vm599, %v944, %v945
      %v947 = vrot.slane %v914, 2
      %v948 = vrot.slane %v915, 2
      %v949 = vsel %vm599, %v947, %v948
      %v950 = vrot.slane %v916, 2
      %v951 = vrot.slane %v917, 2
      %v952 = vsel %vm599, %v950, %v951
      %v953 = vrot.slane %v918, 2
      %v954 = vrot.slane %v919, 2
      %v955 = vsel %vm599, %v953, %v954
      %v956 = vrot.slane %v920, 2
      %v957 = vrot.slane %v921, 2
      %v958 = vsel %vm599, %v956, %v957
      %v959 = vrot.slane %v922, 2
      %v960 = vrot.slane %v923, 2
      %v961 = vsel %vm599, %v959, %v960
      %v962 = vrot.slane %v924, 2
      %v963 = vrot.slane %v925, 2
      %v964 = vsel %vm599, %v962, %v963
      %v965 = vrot.slane %v926, 2
      %v966 = vrot.slane %v927, 2
      %v967 = vsel %vm599, %v965, %v966
      %v976 = vadd.f32 %v900, %v946
      %v977 = vadd.f32 %v901, %v949
      %v978 = vadd.f32 %v902, %v952
      %v979 = vadd.f32 %v903, %v955
      %v980 = vadd.f32 %v904, %v958
      %v981 = vadd.f32 %v905, %v961
      %v982 = vadd.f32 %v906, %v964
      %v983 = vadd.f32 %v907, %v967
      %v984 = vld [vmem:[%s3] sm:$0xff]
      %v985 = vld [vmem:[%s3 + $0x8] sm:$0xff]
      %v986 = vld [vmem:[%s3 + $0x10] sm:$0xff]
      %v987 = vld [vmem:[%s3 + $0x18] sm:$0xff]
      %v989 = vsel %vm415, %v976, 0
      %v992 = vsel %vm415, %v977, 0
      %v995 = vsel %vm415, %v978, 0
      %v998 = vsel %vm415, %v979, 0
      %v1001 = vsel %vm415, %v980, 0
      %v1004 = vsel %vm415, %v981, 0
      %v1007 = vsel %vm415, %v982, 0
      %v1010 = vsel %vm415, %v983, 0
      %1012 = vmatprep.subr.mxu0 0.0
      %1013 = vmatpush1.msra.mxu0 0.0
      %1014 = vmatprep.subr.mxu0 0.0
      %1015 = vmatpush1.msra.mxu0 0.0
      %1016 = vmatprep.subr.mxu0 0.0
      %1017 = vmatpush1.msra.mxu0 0.0
      %1018 = vmatprep.subr.mxu0 0.0
      %1019 = vmatpush1.msra.mxu0 0.0
      %1020 = vmatprep.subr.mxu0 0.0
      %1021 = vmatpush1.msra.mxu0 0.0
      %1022 = vmatprep.subr.mxu0 0.0
      %1023 = vmatpush1.msra.mxu0 0.0
      %1024 = vmatprep.subr.mxu0 0.0
      %1025 = vmatpush1.msra.mxu0 0.0
      %1026 = vmatprep.subr.mxu0 0.0
      %1027 = vmatpush1.msra.mxu0 0.0
      %1028 = vmatprep.subr.mxu0 0.0
      %1029 = vmatpush1.msra.mxu0 0.0
      %1030 = vmatprep.subr.mxu0 0.0
      %1031 = vmatpush1.msra.mxu0 0.0
      %1032 = vmatprep.subr.mxu0 0.0
      %1033 = vmatpush1.msra.mxu0 0.0
      %1034 = vmatprep.subr.mxu0 0.0
      %1035 = vmatpush1.msra.mxu0 0.0
      %1036 = vmatprep.subr.mxu0 0.0
      %1037 = vmatpush1.msra.mxu0 %v987
      %1038 = vmatprep.subr.mxu0 0.0
      %1039 = vmatpush1.msra.mxu0 %v986
      %1040 = vmatprep.subr.mxu0 0.0
      %1041 = vmatpush1.msra.mxu0 %v985
      %1042 = vmatprep.subr.mxu0 0.0
      %1043 = vmatpush1.msra.mxu0 %v984
      %1044 = vmatprep.subr.mxu0 0.0
      %1045 = vmatpush2.msra.mxu0 0.0
      %1046 = vmatprep.subr.mxu0 0.0
      %1047 = vmatpush2.msra.mxu0 0.0
      %1048 = vmatprep.subr.mxu0 0.0
      %1049 = vmatpush2.msra.mxu0 0.0
      %1050 = vmatprep.subr.mxu0 0.0
      %1051 = vmatpush2.msra.mxu0 0.0
      %1052 = vmatprep.subr.mxu0 0.0
      %1053 = vmatpush2.msra.mxu0 0.0
      %1054 = vmatprep.subr.mxu0 0.0
      %1055 = vmatpush2.msra.mxu0 0.0
      %1056 = vmatprep.subr.mxu0 0.0
      %1057 = vmatpush2.msra.mxu0 0.0
      %1058 = vmatprep.subr.mxu0 0.0
      %1059 = vmatpush2.msra.mxu0 0.0
      %1060 = vmatprep.subr.mxu0 0.0
      %1061 = vmatpush2.msra.mxu0 0.0
      %1062 = vmatprep.subr.mxu0 0.0
      %1063 = vmatpush2.msra.mxu0 0.0
      %1064 = vmatprep.subr.mxu0 0.0
      %1065 = vmatpush2.msra.mxu0 0.0
      %1066 = vmatprep.subr.mxu0 0.0
      %1067 = vmatpush2.msra.mxu0 0.0
      %1068 = vmatprep.subr.mxu0 0.0
      %1069 = vmatpush2.msra.mxu0 0.0
      %1070 = vmatprep.subr.mxu0 0.0
      %1071 = vmatpush2.msra.mxu0 0.0
      %1072 = vmatprep.subr.mxu0 0.0
      %1073 = vmatpush2.msra.mxu0 0.0
      %1074 = vmatprep.subr.mxu0 0.0
      %1075 = vmatpush2.msra.mxu0 0.0
      %1076 = vmatprep.mubr.f32.mxu0 0.0
      %1077 = vmatmul.mubr.f32.gmra.mxu0 %v989
      %v1078 = vpop.f32.mrf.mxu0
      %v1079 = vadd.f32 0.0, %v1078
      %v1080 = vpop.f32.mrf.mxu0
      %1081 = vmatprep.mubr.f32.mxu0 0.0
      %1082 = vmatmul.mubr.f32.gmra.mxu0 %v992
      %v1083 = vpop.f32.mrf.mxu0
      %v1084 = vadd.f32 0.0, %v1083
      %v1085 = vpop.f32.mrf.mxu0
      %1086 = vmatprep.mubr.f32.mxu0 0.0
      %1087 = vmatmul.mubr.f32.gmra.mxu0 %v995
      %v1088 = vpop.f32.mrf.mxu0
      %v1089 = vadd.f32 0.0, %v1088
      %v1090 = vpop.f32.mrf.mxu0
      %1091 = vmatprep.mubr.f32.mxu0 0.0
      %1092 = vmatmul.mubr.f32.gmra.mxu0 %v998
      %v1093 = vpop.f32.mrf.mxu0
      %v1094 = vadd.f32 0.0, %v1093
      %v1095 = vpop.f32.mrf.mxu0
      %1096 = vmatprep.mubr.f32.mxu0 0.0
      %1097 = vmatmul.mubr.f32.gmra.mxu0 %v1001
      %v1098 = vpop.f32.mrf.mxu0
      %v1099 = vadd.f32 0.0, %v1098
      %v1100 = vpop.f32.mrf.mxu0
      %1101 = vmatprep.mubr.f32.mxu0 0.0
      %1102 = vmatmul.mubr.f32.gmra.mxu0 %v1004
      %v1103 = vpop.f32.mrf.mxu0
      %v1104 = vadd.f32 0.0, %v1103
      %v1105 = vpop.f32.mrf.mxu0
      %1106 = vmatprep.mubr.f32.mxu0 0.0
      %1107 = vmatmul.mubr.f32.gmra.mxu0 %v1007
      %v1108 = vpop.f32.mrf.mxu0
      %v1109 = vadd.f32 0.0, %v1108
      %v1110 = vpop.f32.mrf.mxu0
      %1111 = vmatprep.mubr.f32.mxu0 0.0
      %1112 = vmatmul.mubr.f32.gmra.mxu0 %v1010
      %v1113 = vpop.f32.mrf.mxu0
      %v1114 = vadd.f32 0.0, %v1113
      %v1115 = vpop.f32.mrf.mxu0
      %1116 = vdwg.mxu0
      %v1117 = vsel %vm415, %v1079, 0.0
      %v1118 = vsel %vm415, %v1084, 0.0
      %v1119 = vadd.f32 %v1117, %v1118
      %v1120 = vsel %vm415, %v1089, 0.0
      %v1121 = vadd.f32 %v1119, %v1120
      %v1122 = vsel %vm415, %v1094, 0.0
      %v1123 = vadd.f32 %v1121, %v1122
      %v1124 = vsel %vm415, %v1099, 0.0
      %v1125 = vadd.f32 %v1123, %v1124
      %v1126 = vsel %vm415, %v1104, 0.0
      %v1127 = vadd.f32 %v1125, %v1126
      %v1128 = vsel %vm415, %v1109, 0.0
      %v1129 = vadd.f32 %v1127, %v1128
      %v1130 = vsel %vm415, %v1114, 0.0
      %v1131 = vadd.f32 %v1129, %v1130
      %1132 = vadd.xlane.f32.xlu0 %v1131
      %v1133 = vpop.xlane.xlu0 %1132
      %v1134 = vrot.slane %v1133, 4
      %v1135 = vadd.f32 %v1133, %v1134
      %v1136 = vrot.slane %v1135, 2
      %v1137 = vadd.f32 %v1135, %v1136
      %v1138 = vrot.slane %v1137, 1
      %v1139 = vadd.f32 %v1137, %v1138
      %s1140 = vtos %v1139
      %s1141 = smul.f32 %s1140, 0.00048828125
      %v1142 = vmul.f32 %v1079, %v1079
      %v1143 = vmul.f32 %v1084, %v1084
      %v1144 = vmul.f32 %v1089, %v1089
      %v1145 = vmul.f32 %v1094, %v1094
      %v1146 = vmul.f32 %v1099, %v1099
      %v1147 = vmul.f32 %v1104, %v1104
      %v1148 = vmul.f32 %v1109, %v1109
      %v1149 = vmul.f32 %v1114, %v1114
      %v1150 = vsel %vm415, %v1142, 0.0
      %v1151 = vsel %vm415, %v1143, 0.0
      %v1152 = vadd.f32 %v1150, %v1151
      %v1153 = vsel %vm415, %v1144, 0.0
      %v1154 = vadd.f32 %v1152, %v1153
      %v1155 = vsel %vm415, %v1145, 0.0
      %v1156 = vadd.f32 %v1154, %v1155
      %v1157 = vsel %vm415, %v1146, 0.0
      %v1158 = vadd.f32 %v1156, %v1157
      %v1159 = vsel %vm415, %v1147, 0.0
      %v1160 = vadd.f32 %v1158, %v1159
      %v1161 = vsel %vm415, %v1148, 0.0
      %v1162 = vadd.f32 %v1160, %v1161
      %v1163 = vsel %vm415, %v1149, 0.0
      %v1164 = vadd.f32 %v1162, %v1163
      %1165 = vadd.xlane.f32.xlu0 %v1164
      %v1166 = vpop.xlane.xlu0 %1165
      %v1167 = vrot.slane %v1166, 4
      %v1168 = vadd.f32 %v1166, %v1167
      %v1169 = vrot.slane %v1168, 2
      %v1170 = vadd.f32 %v1168, %v1169
      %v1171 = vrot.slane %v1170, 1
      %v1172 = vadd.f32 %v1170, %v1171
      %s1173 = vtos %v1172
      %s1174 = smul.f32 %s1173, 0.00048828125
      %s1175 = smul.f32 %s1141, %s1141
      %s1176 = ssub.f32 %s1174, %s1175
      %v1177 = vstv %s1141
      %v1178 = vsub.f32 %v1079, %v1177
      %v1179 = vsub.f32 %v1084, %v1177
      %v1180 = vsub.f32 %v1089, %v1177
      %v1181 = vsub.f32 %v1094, %v1177
      %v1182 = vsub.f32 %v1099, %v1177
      %v1183 = vsub.f32 %v1104, %v1177
      %v1184 = vsub.f32 %v1109, %v1177
      %v1185 = vsub.f32 %v1114, %v1177
      %s1186 = sadd.f32 %s1176, 1e-05
      %v1187 = vstv %s1186
      %v1188 = vrsqrt.pop %v1187
      %s1189 = vtos %v1188
      %v1190 = vstv %s1189
      %v1191 = vmul.f32 %v1178, %v1190
      %v1192 = vmul.f32 %v1179, %v1190
      %v1193 = vmul.f32 %v1180, %v1190
      %v1194 = vmul.f32 %v1181, %v1190
      %v1195 = vmul.f32 %v1182, %v1190
      %v1196 = vmul.f32 %v1183, %v1190
      %v1197 = vmul.f32 %v1184, %v1190
      %v1198 = vmul.f32 %v1185, %v1190
      %v1199 = vlaneseq
      %v1200 = vshrl.u32 %v1199, 7
      %v1201 = vsub.s32 1, %v1200
      %v1202 = vrot.slane %v274, %v1201
      %v1203 = vmul.f32 %v1191, %v1202
      %v1204 = vmul.f32 %v1192, %v1202
      %v1205 = vmul.f32 %v1193, %v1202
      %v1206 = vmul.f32 %v1194, %v1202
      %v1207 = vmul.f32 %v1195, %v1202
      %v1208 = vmul.f32 %v1196, %v1202
      %v1209 = vmul.f32 %v1197, %v1202
      %v1210 = vmul.f32 %v1198, %v1202
      %v1211 = vlaneseq
      %v1212 = vshrl.u32 %v1211, 7
      %v1213 = vsub.s32 2, %v1212
      %v1214 = vrot.slane %v274, %v1213
      %v1215 = vadd.f32 %v1203, %v1214
      %v1216 = vadd.f32 %v1204, %v1214
      %v1217 = vadd.f32 %v1205, %v1214
      %v1218 = vadd.f32 %v1206, %v1214
      %v1219 = vadd.f32 %v1207, %v1214
      %v1220 = vadd.f32 %v1208, %v1214
      %v1221 = vadd.f32 %v1209, %v1214
      %v1222 = vadd.f32 %v1210, %v1214
      %s1223 = sld [smem:[#allocation3]]
      %vm1224 = vcmp.ge.f32.partialorder %v1215, 0.0
      %vm1225 = vcmp.ge.f32.partialorder %v1216, 0.0
      %vm1226 = vcmp.ge.f32.partialorder %v1217, 0.0
      %vm1227 = vcmp.ge.f32.partialorder %v1218, 0.0
      %vm1228 = vcmp.ge.f32.partialorder %v1219, 0.0
      %vm1229 = vcmp.ge.f32.partialorder %v1220, 0.0
      %vm1230 = vcmp.ge.f32.partialorder %v1221, 0.0
      %vm1231 = vcmp.ge.f32.partialorder %v1222, 0.0
      %v1232 = vstv %s1223
      %v1233 = vmul.f32 %v1232, %v1215
      %v1234 = vmul.f32 %v1232, %v1216
      %v1235 = vmul.f32 %v1232, %v1217
      %v1236 = vmul.f32 %v1232, %v1218
      %v1237 = vmul.f32 %v1232, %v1219
      %v1238 = vmul.f32 %v1232, %v1220
      %v1239 = vmul.f32 %v1232, %v1221
      %v1240 = vmul.f32 %v1232, %v1222
      %v1241 = vsel %vm1224, %v1215, %v1233
      %v1242 = vsel %vm1225, %v1216, %v1234
      %v1243 = vsel %vm1226, %v1217, %v1235
      %v1244 = vsel %vm1227, %v1218, %v1236
      %v1245 = vsel %vm1228, %v1219, %v1237
      %v1246 = vsel %vm1229, %v1220, %v1238
      %v1247 = vsel %vm1230, %v1221, %v1239
      %v1248 = vsel %vm1231, %v1222, %v1240
      %v1249 = vld [vmem:[%s267] sm:$0xff]
      %v1250 = vld [vmem:[%s267 + $0x8] sm:$0xff]
      %v1251 = vld [vmem:[%s267 + $0x10] sm:$0xff]
      %v1252 = vld [vmem:[%s267 + $0x18] sm:$0xff]
      %v1253 = vld [vmem:[%s267 + $0x20] sm:$0xff]
      %v1254 = vld [vmem:[%s267 + $0x28] sm:$0xff]
      %v1255 = vld [vmem:[%s267 + $0x30] sm:$0xff]
      %v1256 = vld [vmem:[%s267 + $0x38] sm:$0xff]
      %v1257 = vadd.f32 %v1241, %v1249
      %v1258 = vadd.f32 %v1242, %v1250
      %v1259 = vadd.f32 %v1243, %v1251
      %v1260 = vadd.f32 %v1244, %v1252
      %v1261 = vadd.f32 %v1245, %v1253
      %v1262 = vadd.f32 %v1246, %v1254
      %v1263 = vadd.f32 %v1247, %v1255
      %v1264 = vadd.f32 %v1248, %v1256
      %1265 = vst.msk [vmem:[%s272] sm:$0xff] %vm415, %v1257
      %1266 = vst.msk [vmem:[%s272 + $0x8] sm:$0xff] %vm415, %v1258
      %1267 = vst.msk [vmem:[%s272 + $0x10] sm:$0xff] %vm415, %v1259
      %1268 = vst.msk [vmem:[%s272 + $0x18] sm:$0xff] %vm415, %v1260
      %1269 = vst.msk [vmem:[%s272 + $0x20] sm:$0xff] %vm415, %v1261
      %1270 = vst.msk [vmem:[%s272 + $0x28] sm:$0xff] %vm415, %v1262
      %1271 = vst.msk [vmem:[%s272 + $0x30] sm:$0xff] %vm415, %v1263
      %1272 = vst.msk [vmem:[%s272 + $0x38] sm:$0xff] %vm415, %v1264
      %p1273 = scmp.lt.s32.totalorder %s18, 1
      %s1274 = scalar_select %p1273, %s18, 1
      %s1275 = smul.addr %s1274, 8
      %s1276 = smul.addr %s1275, 8
      %s1277 = scalar_lea.vmem %s6, %s1276
      // Predicated region
      $region45: #{panel_forward.1} parent=43 // pred_check
        %p1278 = pneg %p172
      $region46: #{panel_forward.1} parent=43 // pred_check_branch
        %1280 = sbr.rel (%p1278) target = $region48
      $region47: #{panel_forward.1} parent=43 // pred_region
        _
      $region48: #{panel_forward.1} parent=43 // pred_fallthru
        _
    $region44: #{panel_forward.1} parent=5 // pred_fallthru
      _
    %p1281 = scmp.le.s32.totalorder 2, %s13
    // Predicated region
    $region49: #{panel_forward.1} parent=5 // pred_check
      %p1282 = pneg %p1281
    $region50: #{panel_forward.1} parent=5 // pred_check_branch
      %1284 = sbr.rel (%p1282) target = $region52
    $region51: #{panel_forward.1} parent=5 // pred_region
      %s1285 = ssub.s32 %s13, 2
      // Predicated region
      $region53: #{panel_forward.1} parent=51 // pred_check
        %p1286 = pneg %p178
      $region54: #{panel_forward.1} parent=51 // pred_check_branch
        %1288 = sbr.rel (%p1286) target = $region56
      $region55: #{panel_forward.1} parent=51 // pred_region
        %p1289 = scmp.lt.s32.totalorder %s19, 1
        %s1290 = scalar_select %p1289, %s19, 1
        %s1291 = smul.addr %s1290, 8
        %s1292 = smul.addr %s1291, 8
        %s1293 = scalar_lea.vmem %s6, %s1292
      $region56: #{panel_forward.1} parent=51 // pred_fallthru
        _
    $region52: #{panel_forward.1} parent=5 // pred_fallthru
      _
  $region6: #{panel_forward.1} parent=0 // loop_footer
    %s17 = sadd.s32 1, %s13
  $region7: #{panel_forward.1} parent=0 // loop_footer_branch
    %12 = sbr.rel target = $region3
  $region8: #{panel_forward.1} parent=0 // loop_exit
    _

</llo_original>
